<compile_context>
chip_gen: v5e
topology: v5e:2x2
jax: 0.10.0
libtpu: 0.0.40
codegen_flags: <defaults>
</compile_context>

<pallas_src>
import math

import jax
import jax.numpy as jnp
from jax import lax
from jax.experimental import pallas as pl
from jax.experimental.pallas import tpu as pltpu


def _make_kernel(c_in: int, hidden: int):
    inv1 = 1.0 / math.sqrt(c_in)     # e3nn element normalization: 1/sqrt(fan_in)
    inv2 = 1.0 / math.sqrt(hidden)

    def kernel(x_ref, w1_ref, w2_ref, o_ref):
        # linear_1: dense matmul on packed rows (block-diagonal W1), f32 accum.
        h = jnp.dot(x_ref[...], w1_ref[...],
                    preferred_element_type=jnp.float32) * inv1   # [TM, pack*H]
        # SiLU gate on the scalar (0e) channels, in f32 (sigmoid -> EUP).
        g = h * jax.nn.sigmoid(h)
        # linear_2 in NT form: contract the last dims so the result is a
        # lane-dense [pack, TM] slab (tile rows live on the 128-lane axis).
        # TODO(synk): on v7x, if the implied transpose of g becomes the binding
        #             slot once DMA is ~3.2 TB/s, switch to g @ w2_s.T instead.
        out = lax.dot_general(
            w2_ref[...], g.astype(w2_ref.dtype),
            dimension_numbers=(((1,), (1,)), ((), ())),
            preferred_element_type=jnp.float32) * inv2           # [pack, TM]
        o_ref[...] = out.astype(o_ref.dtype)

    return kernel


def _block_diag(w: jax.Array, pack: int) -> jax.Array:
    """[a, b] -> [pack*a, pack*b] with `pack` copies of w on the diagonal."""
    if pack == 1:
        return w
    a, b = w.shape
    eye = jnp.eye(pack, dtype=w.dtype)
    return (eye[:, None, :, None] * w[None, :, None, :]).reshape(pack * a, pack * b)


def _row_block(w2: jax.Array, pack: int) -> jax.Array:
    """w2: [H, 1] -> [pack, pack*H]; row j holds w2 in lanes [j*H, (j+1)*H)."""
    hidden = w2.shape[0]
    if pack == 1:
        return w2.T
    eye = jnp.eye(pack, dtype=w2.dtype)
    return (eye[:, :, None] * w2[:, 0][None, None, :]).reshape(pack, pack * hidden)


def _choose_pack(c_in: int, hidden: int, w_itemsize: int) -> int:
    """Nodes packed side-by-side so packed rows are lane-dense (mult. of 128)."""
    if c_in % 128 == 0:
        return 1                                   # already lane-dense
    pack = 128 // math.gcd(c_in, 128)
    w1_b_bytes = (pack * c_in) * (pack * hidden) * w_itemsize
    if pack > 16 or pack * c_in > 1024 or w1_b_bytes > (4 << 20):
        return 1                                   # lane-sparse fallback
    return pack


def pack_readout_weights(w1: jax.Array, w2: jax.Array):
    """Precompute once per parameter set (hoist out of the per-call path)."""
    c_in, hidden = w1.shape
    pack = _choose_pack(c_in, hidden, jnp.dtype(w1.dtype).itemsize)
    return pack, _block_diag(w1, pack), _row_block(w2, pack)


def _num_tensorcores() -> int:
    try:
        kind = jax.devices()[0].device_kind.lower()
    except Exception:
        return 1
    return 2 if ("v7" in kind or "7x" in kind) else 1


def _choose_tile_rows(total_rows, pack, c_in, hidden, itemsize, num_tc):
    """Pick the packed-row tile size.

    Budget a ~16 MiB working set (double-buffered x tile + f32 h/g
    intermediates + double-buffered output slab) so big tiles amortize the
    ~0.35 us per-grid-step cost while staying well inside the 32 MiB scoped
    VMEM we request (safe on v5e/v6e's 128 MiB and v7x's 64 MiB).
    """
    per_row = 2 * pack * c_in * itemsize + 2 * pack * hidden * 4 + 2 * pack * 4
    t = min(total_rows, 16384, max(128, (16 << 20) // per_row))
    # v7x has 2 TensorCores: give each core >= 2 tiles so per-core double
    # buffering overlaps DMA with compute.  Single-TC chips (v5e/v6e) keep one
    # big tile when it fits (splitting only adds grid-step overhead there).
    if num_tc > 1:
        per_core = -(-total_rows // (2 * num_tc))
        if per_core >= 128:
            t = min(t, per_core)
    # Alignment: multiples of 128 keep the [pack, tile_rows] output stores
    # lane-dense (unmasked vst); small tiles just keep the x tile sublane
    # packed (8 rows for f32, 16 for bf16).
    sub = max(8, 32 // itemsize)
    if t >= 256:
        t = -(-t // 128) * 128
    else:
        t = -(-t // sub) * sub
    return total_rows if t >= total_rows else t   # single exact tile if it fits


def nonlinear_readout(x: jax.Array, w1: jax.Array, w2: jax.Array,
                      *, tile_rows: int | None = None, packed=None) -> jax.Array:
    """Fused NonLinearReadoutBlock forward. x: [N, C_in] -> [N, 1] (f32).

    Feed bf16 x/w1/w2 where possible: the kernel is HBM-bandwidth bound and
    accumulation + SiLU stay in f32 regardless (cast upstream, not here, so it
    does not add an extra pass over x).
    """
    n, c_in = x.shape
    c_in_w, hidden = w1.shape
    assert c_in == c_in_w and w2.shape == (hidden, 1)
    itemsize = jnp.dtype(x.dtype).itemsize

    if packed is None:
        packed = pack_readout_weights(w1, w2)      # hoist: precompute in a model
    pack, w1_b, w2_s = packed
    assert w1_b.shape == (pack * c_in, pack * hidden)
    assert w2_s.shape == (pack, pack * hidden)

    # Minimal pad only: up to (pack-1) rows so the lane-dense reshape is valid.
    # When N % pack == 0 (the common case) x is never copied.
    rem = (-n) % pack
    x_pad = jnp.pad(x, ((0, rem), (0, 0))) if rem else x
    total_rows = (n + rem) // pack
    x_p = x_pad.reshape(total_rows, pack * c_in)   # contiguous -> free reshape

    num_tc = _num_tensorcores()
    if tile_rows is None:
        tile_rows = _choose_tile_rows(total_rows, pack, c_in, hidden, itemsize, num_tc)
    else:
        assert tile_rows > 0
        tile_rows = min(tile_rows, total_rows)
        assert tile_rows == total_rows or tile_rows % 8 == 0
    num_tiles = -(-total_rows // tile_rows)

    kernel = _make_kernel(c_in, hidden)

    out = pl.pallas_call(
        kernel,
        out_shape=jax.ShapeDtypeStruct((num_tiles, pack, tile_rows), jnp.float32),
        grid_spec=pltpu.PrefetchScalarGridSpec(
            num_scalar_prefetch=0,
            grid=(num_tiles,),
            in_specs=[
                # x tile; the last tile may read past the end of x_p — Pallas
                # pads the read and those rows only feed discarded outputs.
                pl.BlockSpec((tile_rows, pack * c_in), lambda i: (i, 0)),
                pl.BlockSpec((pack * c_in, pack * hidden), lambda i: (0, 0)),  # W1 resident
                pl.BlockSpec((pack, pack * hidden), lambda i: (0, 0)),         # W2 resident
            ],
            out_specs=pl.BlockSpec((None, pack, tile_rows), lambda i: (i, 0, 0)),
        ),
        compiler_params=pltpu.CompilerParams(
            dimension_semantics=("parallel",),
            vmem_limit_bytes=32 << 20),
        cost_estimate=pl.CostEstimate(
            # Logical FLOPs; the MXU actually executes ~pack x this on the
            # block-diagonal weights.  Advisory only — kernel is HBM-bound.
            flops=int(2 * n * hidden * (c_in + 1)),
            transcendentals=int(n * hidden),
            bytes_accessed=int(n * c_in * itemsize + 4 * n
                               + w1_b.size * jnp.dtype(w1_b.dtype).itemsize
                               + w2_s.size * jnp.dtype(w2_s.dtype).itemsize)),
    )(x_p, w1_b, w2_s)

    # out[i, j, r] holds node (i*tile_rows + r)*pack + j  -> unpack to [N, 1].
    # TODO(synk): in a full model, fold this tiny unpack transpose into the
    #             downstream consumer (e.g. the per-graph segment sum).
    out = out.transpose(0, 2, 1).reshape(num_tiles * tile_rows * pack)[:n]
    return out.reshape(n, 1)


def reference(x, w1, w2):
    h = (x @ w1) / math.sqrt(x.shape[1])
    h = h * jax.nn.sigmoid(h)
    return (h @ w2) / math.sqrt(w1.shape[1])


if __name__ == "__main__":
    # MACE-like small config: irreps_in="32x0e", MLP_irreps="16x0e", out="0e".
    N, C_IN, HIDDEN = 10, 32, 16

    key = jax.random.PRNGKey(0)
    kx, kw1, kw2, kx2 = jax.random.split(key, 4)
    x = jax.random.normal(kx, (N, C_IN), dtype=jnp.float32)
    w1 = jax.random.normal(kw1, (C_IN, HIDDEN), dtype=jnp.float32)
    w2 = jax.random.normal(kw2, (HIDDEN, 1), dtype=jnp.float32)

    # Small N (exercises the <= pack-1 row pad path).
    out = jax.block_until_ready(nonlinear_readout(x, w1, w2))
    ref = reference(x, w1, w2)
    assert out.shape == (N, 1)
    assert jnp.allclose(out, ref, atol=1e-4, rtol=1e-4), (out, ref)

    # Larger N, copy-free path (N % pack == 0), pre-packed weights reused.
    N2 = 1000
    x2 = jax.random.normal(kx2, (N2, C_IN), dtype=jnp.float32)
    packed = pack_readout_weights(w1, w2)
    out2 = jax.block_until_ready(nonlinear_readout(x2, w1, w2, packed=packed))
    ref2 = reference(x2, w1, w2)
    assert out2.shape == (N2, 1)
    assert jnp.allclose(out2, ref2, atol=1e-4, rtol=1e-4)

    # Forced multi-tile path with a partial last tile (OOB input reads feed
    # only discarded output columns).
    out2b = jax.block_until_ready(
        nonlinear_readout(x2, w1, w2, tile_rows=64, packed=packed))
    assert jnp.allclose(out2b, ref2, atol=1e-4, rtol=1e-4)

    # bf16-fed variant (halves HBM traffic of this memory-bound kernel);
    # accumulation and SiLU remain f32 inside the kernel.
    out3 = jax.block_until_ready(
        nonlinear_readout(x2.astype(jnp.bfloat16), w1.astype(jnp.bfloat16),
                          w2.astype(jnp.bfloat16)))
    assert jnp.allclose(out3, ref2, atol=1e-1, rtol=1e-1)

    print("KERNEL_OK")
</pallas_src>

<mosaic_0001>
module attributes {stable_mosaic.version = 11 : i64} {
  func.func @kernel(%arg0: i32, %arg1: memref<3x128xf32, #tpu.memory_space<vmem>>, %arg2: memref<128x64xf32, #tpu.memory_space<vmem>>, %arg3: memref<4x64xf32, #tpu.memory_space<vmem>>, %arg4: memref<1x4x3xf32, #tpu.memory_space<vmem>>) attributes {dimension_semantics = [#tpu.dimension_semantics<parallel>], iteration_bounds = array<i64: 1>, scalar_prefetch = 0 : i64, scratch_operands = 0 : i64, tpu.core_type = #tpu.core_type<tc>, window_params = [{transform_indices = @transform_0, window_bounds = array<i64: 3, 128>}, {pipeline_mode = #tpu.pipeline_mode<synchronous>, transform_indices = @transform_1, window_bounds = array<i64: 128, 64>}, {pipeline_mode = #tpu.pipeline_mode<synchronous>, transform_indices = @transform_2, window_bounds = array<i64: 4, 64>}, {transform_indices = @transform_3, window_bounds = array<i64: 1, 4, 3>}]} {
    %c0 = arith.constant 0 : index
    %c0_0 = arith.constant 0 : index
    %0 = vector.load %arg1[%c0, %c0_0] : memref<3x128xf32, #tpu.memory_space<vmem>>, vector<3x128xf32>
    %c0_1 = arith.constant 0 : index
    %c0_2 = arith.constant 0 : index
    %1 = vector.load %arg2[%c0_1, %c0_2] : memref<128x64xf32, #tpu.memory_space<vmem>>, vector<128x64xf32>
    %cst = arith.constant dense<0.000000e+00> : vector<3x64xf32>
    %2 = tpu.matmul %0, %1, %cst {dimension_numbers = #tpu.dot_dimension_numbers<[1], [0], [0], [1], [0, 0, 1, 1], [], []>} : vector<3x128xf32>, vector<128x64xf32>, vector<3x64xf32> -> vector<3x64xf32>
    %cst_3 = arith.constant 0.176776692 : f32
    %3 = vector.broadcast %cst_3 : f32 to vector<3x64xf32>
    %4 = arith.mulf %2, %3 : vector<3x64xf32>
    %5 = arith.negf %4 : vector<3x64xf32>
    %6 = math.exp %5 : vector<3x64xf32>
    %cst_4 = arith.constant 1.000000e+00 : f32
    %7 = vector.broadcast %cst_4 : f32 to vector<3x64xf32>
    %8 = arith.addf %7, %6 : vector<3x64xf32>
    %9 = arith.divf %7, %8 : vector<3x64xf32>
    %10 = arith.mulf %4, %9 : vector<3x64xf32>
    %c0_5 = arith.constant 0 : index
    %c0_6 = arith.constant 0 : index
    %11 = vector.load %arg3[%c0_5, %c0_6] : memref<4x64xf32, #tpu.memory_space<vmem>>, vector<4x64xf32>
    %cst_7 = arith.constant dense<0.000000e+00> : vector<4x3xf32>
    %12 = tpu.matmul %11, %10, %cst_7 {dimension_numbers = #tpu.dot_dimension_numbers<[1], [1], [0], [0], [0, 0, 1, 0], [], []>} : vector<4x64xf32>, vector<3x64xf32>, vector<4x3xf32> -> vector<4x3xf32>
    %cst_8 = arith.constant 2.500000e-01 : f32
    %13 = vector.broadcast %cst_8 : f32 to vector<4x3xf32>
    %14 = arith.mulf %12, %13 : vector<4x3xf32>
    %c0_9 = arith.constant 0 : index
    %c0_10 = arith.constant 0 : index
    %c0_11 = arith.constant 0 : index
    %15 = vector.load %arg4[%c0_9, %c0_10, %c0_11] : memref<1x4x3xf32, #tpu.memory_space<vmem>>, vector<1x4x3xf32>
    %16 = vector.shape_cast %15 : vector<1x4x3xf32> to vector<4x3xf32>
    %17 = vector.shape_cast %14 : vector<4x3xf32> to vector<1x4x3xf32>
    tpu.vector_store %arg4[%c0_9, %c0_10, %c0_11], %17 {strides = array<i32>} : memref<1x4x3xf32, #tpu.memory_space<vmem>>, vector<1x4x3xf32>,
    return
  }
  func.func @transform_0(%arg0: i32) -> (i32, i32) {
    %c0_i32 = arith.constant 0 : i32
    %c0_i32_0 = arith.constant 0 : i32
    return %arg0, %c0_i32 : i32, i32
  }
  func.func @transform_1(%arg0: i32) -> (i32, i32) {
    %c0_i32 = arith.constant 0 : i32
    %c0_i32_0 = arith.constant 0 : i32
    %c0_i32_1 = arith.constant 0 : i32
    return %c0_i32, %c0_i32_0 : i32, i32
  }
  func.func @transform_2(%arg0: i32) -> (i32, i32) {
    %c0_i32 = arith.constant 0 : i32
    %c0_i32_0 = arith.constant 0 : i32
    %c0_i32_1 = arith.constant 0 : i32
    return %c0_i32, %c0_i32_0 : i32, i32
  }
  func.func @transform_3(%arg0: i32) -> (i32, i32, i32) {
    %c0_i32 = arith.constant 0 : i32
    %c0_i32_0 = arith.constant 0 : i32
    %c0_i32_1 = arith.constant 0 : i32
    return %arg0, %c0_i32, %c0_i32_0 : i32, i32, i32
  }
}

</mosaic_0001>

<llo_original>
// kernel: tpu_custom_call.1
$region0: #{tpu_custom_call.1}
  #allocation0 [shape = 'u32[]', space=smem, size = 0x4, offset = 0x4, fixed_abs, tag = 'smem constant byte address 0x4 - core index']
  #allocation1 [shape = 'u32[72,128]{1,0:T(1,128)}', space=vmem, size = 0x9000, scoped, tag = 'internal scratch']
  %s0 = inlined_call_operand.vmem [shape: f32[3,128], index: 0, kind: input, shape index: {}]
  %s1 = inlined_call_operand.vmem [shape: f32[128,64], index: 1, kind: input, shape index: {}]
  %s2 = inlined_call_operand.vmem [shape: f32[4,64], index: 2, kind: input, shape index: {}]
  %s3 = inlined_call_operand.vmem [shape: f32[1,4,3], index: 3, kind: output, shape index: {}]
  %s4 = sld [smem:[#allocation0]]
  $region22: #{tpu_custom_call.1} parent=0
    _
  %s6 = ssub.s32 1, %s4
  %s7 = scalar_select 0, %s6, %s4
  // Predicated region
  $region2: #{tpu_custom_call.1} parent=0 // pred_check
    _
  $region3: #{tpu_custom_call.1} parent=0 // pred_check_branch
    %9 = sbr.rel (0) target = $region5
  $region4: #{tpu_custom_call.1} parent=0 // pred_region
    _
  $region5: #{tpu_custom_call.1} parent=0 // pred_fallthru
    _
  // Predicated region
  $region6: #{tpu_custom_call.1} parent=0 // pred_check
    _
  $region7: #{tpu_custom_call.1} parent=0 // pred_check_branch
    %11 = sbr.rel (0) target = $region9
  $region8: #{tpu_custom_call.1} parent=0 // pred_region
    _
  $region9: #{tpu_custom_call.1} parent=0 // pred_fallthru
    _
  // Predicated region
  $region10: #{tpu_custom_call.1} parent=0 // pred_check
    _
  $region11: #{tpu_custom_call.1} parent=0 // pred_check_branch
    %13 = sbr.rel (0) target = $region13
  $region12: #{tpu_custom_call.1} parent=0 // pred_region
    _
  $region13: #{tpu_custom_call.1} parent=0 // pred_fallthru
    _
  %v14 = vld [vmem:[%s0] sm:$0x7]
  %v15 = vld [vmem:[%s1] sm:$0xff]
  %v16 = vld [vmem:[%s1 + $0x8] sm:$0xff]
  %v17 = vld [vmem:[%s1 + $0x10] sm:$0xff]
  %v18 = vld [vmem:[%s1 + $0x18] sm:$0xff]
  %v19 = vld [vmem:[%s1 + $0x20] sm:$0xff]
  %v20 = vld [vmem:[%s1 + $0x28] sm:$0xff]
  %v21 = vld [vmem:[%s1 + $0x30] sm:$0xff]
  %v22 = vld [vmem:[%s1 + $0x38] sm:$0xff]
  %v23 = vld [vmem:[%s1 + $0x40] sm:$0xff]
  %v24 = vld [vmem:[%s1 + $0x48] sm:$0xff]
  %v25 = vld [vmem:[%s1 + $0x50] sm:$0xff]
  %v26 = vld [vmem:[%s1 + $0x58] sm:$0xff]
  %v27 = vld [vmem:[%s1 + $0x60] sm:$0xff]
  %v28 = vld [vmem:[%s1 + $0x68] sm:$0xff]
  %v29 = vld [vmem:[%s1 + $0x70] sm:$0xff]
  %v30 = vld [vmem:[%s1 + $0x78] sm:$0xff]
  %31 = vmatpush.msra.mxu0 %v30
  %32 = vmatpush.msra.mxu0 %v29
  %33 = vmatpush.msra.mxu0 %v28
  %34 = vmatpush.msra.mxu0 %v27
  %35 = vmatpush.msra.mxu0 %v26
  %36 = vmatpush.msra.mxu0 %v25
  %37 = vmatpush.msra.mxu0 %v24
  %38 = vmatpush.msra.mxu0 %v23
  %39 = vmatpush.msra.mxu0 %v22
  %40 = vmatpush.msra.mxu0 %v21
  %41 = vmatpush.msra.mxu0 %v20
  %42 = vmatpush.msra.mxu0 %v19
  %43 = vmatpush.msra.mxu0 %v18
  %44 = vmatpush.msra.mxu0 %v17
  %45 = vmatpush.msra.mxu0 %v16
  %46 = vmatpush.msra.mxu0 %v15
  %47 = vmatmul.f32.gmra.mxu0 %v14
  %v48 = vpop.f32.mrf.mxu0
  %v49 = vadd.f32 0.0, %v48
  %50 = vdwg.mxu0
  %v51 = vmul.f32 %v49, 0.17677669
  %v52 = vxor.u32 %v51, 2147483648
  %v53 = vmul.f32 %v52, 1.442695
  %v54 = vpow.pop %v53
  %v55 = vadd.f32 %v54, 1.0
  %v56 = vrcp.pop %v55
  %v57 = vmul.f32 %v55, %v56
  %v58 = vsub.f32 1.0, %v57
  %v59 = vmul.f32 %v56, %v58
  %v60 = vadd.f32 %v56, %v59
  %vm61 = vweird.f32 %v55
  %vm62 = vweird.f32 %v56
  %vm63 = vmor %vm61, %vm62
  %v64 = vsel %vm63, %v56, %v60
  %v65 = vand.u32 2147483647, %v55
  %vm66 = vcmp.eq.f32.partialorder %v65, 8.507059e+37
  %v67 = vand.u32 %v55, 2147483648
  %v68 = vor.u32 1.1754944e-38, %v67
  %v69 = vsel %vm66, %v68, %v64
  %v70 = vmul.f32 1.0, %v69
  %v71 = vmul.f32 %v51, %v70
  %v72 = vld [vmem:[%s2] sm:$0xf]
  %vm73 = vcmask 523264
  %v75 = vsel %vm73, %v72, 0
  %v78 = vsel %vm73, %v71, 0
  %80 = vmatpush.xpose.msra.mxu0 0.0
  %81 = vmatpush.xpose.msra.mxu0 0.0
  %82 = vmatpush.xpose.msra.mxu0 0.0
  %83 = vmatpush.xpose.msra.mxu0 0.0
  %84 = vmatpush.xpose.msra.mxu0 0.0
  %85 = vmatpush.xpose.msra.mxu0 0.0
  %86 = vmatpush.xpose.msra.mxu0 0.0
  %87 = vmatpush.xpose.msra.mxu0 0.0
  %88 = vmatpush.xpose.msra.mxu0 0.0
  %89 = vmatpush.xpose.msra.mxu0 0.0
  %90 = vmatpush.xpose.msra.mxu0 0.0
  %91 = vmatpush.xpose.msra.mxu0 0.0
  %92 = vmatpush.xpose.msra.mxu0 0.0
  %93 = vmatpush.xpose.msra.mxu0 0.0
  %94 = vmatpush.xpose.msra.mxu0 0.0
  %95 = vmatpush.xpose.msra.mxu0 %v78
  %96 = vmatmul.f32.gmra.mxu0 %v75
  %v97 = vpop.f32.mrf.mxu0
  %v98 = vadd.f32 0.0, %v97
  %99 = vdwg.mxu0
  %v100 = vmul.f32 %v98, 0.25
  %vm101 = vcmask 19456
  %102 = vst.msk [vmem:[%s3] sm:$0xf] %vm101, %v100
  // Predicated region
  $region14: #{tpu_custom_call.1} parent=0 // pred_check
    _
  $region15: #{tpu_custom_call.1} parent=0 // pred_check_branch
    %104 = sbr.rel (0) target = $region17
  $region16: #{tpu_custom_call.1} parent=0 // pred_region
    _
  $region17: #{tpu_custom_call.1} parent=0 // pred_fallthru
    _
  // Predicated region
  $region18: #{tpu_custom_call.1} parent=0 // pred_check
    _
  $region19: #{tpu_custom_call.1} parent=0 // pred_check_branch
    %106 = sbr.rel (0) target = $region21
  $region20: #{tpu_custom_call.1} parent=0 // pred_region
    _
  $region21: #{tpu_custom_call.1} parent=0 // pred_fallthru
    _

</llo_original>
